<compile_context>
chip_gen: v6e
topology: v6e:2x2x1
jax: 0.10.0
libtpu: 0.0.40
codegen_flags: <defaults>
</compile_context>

<pallas_src>
import math

import jax
import jax.numpy as jnp
from jax.experimental import pallas as pl

# ----------------------------- configuration --------------------------------
EXTRA_FEATURES = 32
DENS_INPUT_SIZE = [128, 64]                       # module default
NUM_CLASSES = 4
H_TRANS = DENS_INPUT_SIZE[0] - EXTRA_FEATURES     # 96: transformer hidden size
D0, D1 = DENS_INPUT_SIZE                          # 128, 64
SEQ = 8
BATCH = 2
BN_EPS = 1e-5
COS_EPS = 1e-8
LOGIT_PAD = 128                                   # lane-dense logits slab
INV_SQRT_H = 1.0 / math.sqrt(H_TRANS)


# ------------------------------ fused kernel ---------------------------------
def _fused_kernel(pair_ref, cls_ref, man_ref,
                  wenc_ref, benc_ref, w1_ref, b1_ref, wfc_ref, bfc_ref,
                  logits_ref, attn_ref):
    B = pair_ref.shape[0]

    # ---- synthetic encoder: CLS rows of pair & claim, batched, lane-dense ---
    # cls_ref is (2B, 128): rows [0,B) = pair CLS, [B,2B) = claim CLS; lanes
    # >= 96 are zero and w_enc is zero-padded, so padded lanes stay exactly 0.
    hid = jnp.tanh(
        jnp.dot(cls_ref[...], wenc_ref[...], preferred_element_type=jnp.float32)
        + benc_ref[...])                                   # (2B, 128)
    pair_cls = hid[:B, :]                                  # (B, 128)
    claim_cls = hid[B:, :]                                 # (B, 128)

    # ---- pair-path self-attention map (module returns it; claim path skipped)
    pair_x = pair_ref[...]                                 # (B, S, 96)
    scores = jnp.einsum("bsd,btd->bst", pair_x, pair_x,
                        preferred_element_type=jnp.float32) * INV_SQRT_H
    scores = scores - jnp.max(scores, axis=-1, keepdims=True)
    e = jnp.exp(scores)
    attn_ref[...] = e / jnp.sum(e, axis=-1, keepdims=True)

    # ---- head: dense0 (BatchNorm folded) -> Dropout(identity) -> ReLU -------
    # manual features arrive pre-placed at lanes [96,128) with zeros elsewhere,
    # so the concat([pair_cls, manual]) of the module is a plain add here.
    feat = pair_cls + man_ref[...]                         # (B, 128), lane-dense
    h = jnp.dot(feat, w1_ref[...],
                preferred_element_type=jnp.float32) + b1_ref[...]
    h = jnp.maximum(h, 0.0)                                # (B, 64)

    # ---- cosine similarity along features (padding lanes are zero -> exact) -
    dotpc = jnp.sum(pair_cls * claim_cls, axis=1, keepdims=True)
    n_pair = jnp.sqrt(jnp.sum(pair_cls * pair_cls, axis=1, keepdims=True))
    n_claim = jnp.sqrt(jnp.sum(claim_cls * claim_cls, axis=1, keepdims=True))
    cos = dotpc / jnp.maximum(n_pair * n_claim, COS_EPS)   # (B, 1)

    # ---- final fc: concat([h, cos]) @ Wfc, written as a lane-dense slab -----
    wfc = wfc_ref[...]                                     # (D1+1, 128) zero-padded
    logits_ref[...] = (
        jnp.dot(h, wfc[:D1, :], preferred_element_type=jnp.float32)
        + cos * wfc[D1:, :]
        + bfc_ref[...])                                    # (B, 128)


def _fused_call(pair_x, cls_pad, man_pad, p):
    B, S, _ = pair_x.shape
    # No grid: whole (tiny) arrays live in VMEM for the single kernel launch.
    # Single-TensorCore execution is accepted deliberately at these sizes.
    return pl.pallas_call(
        _fused_kernel,
        out_shape=[
            jax.ShapeDtypeStruct((B, LOGIT_PAD), jnp.float32),
            jax.ShapeDtypeStruct((B, S, S), jnp.float32),
        ],
    )(pair_x, cls_pad, man_pad,
      p["w_enc_pad"], p["b_enc_pad"], p["w1_folded"], p["b1_folded"],
      p["w_fc_pad"], p["b_fc_pad"])


# ------------------------------- full forward --------------------------------
@jax.jit
def transformer_with_extra_features_forward(params, transformer_input,
                                             claim_input, manual_features,
                                             labels=None):
    B = transformer_input.shape[0]

    # CLS rows of both encoder inputs, stacked along batch and zero-padded to
    # 128 lanes (layout plumbing only; done once in the jitted wrapper).
    cls_stack = jnp.concatenate(
        [transformer_input[:, 0, :], claim_input[:, 0, :]], axis=0)  # (2B, 96)
    cls_pad = jnp.pad(cls_stack, ((0, 0), (0, D0 - H_TRANS)))        # (2B, 128)

    # Manual features placed at lanes [96, 128) so in-kernel add == concat.
    man_pad = jnp.pad(manual_features.astype(jnp.float32),
                      ((0, 0), (H_TRANS, 0)))                        # (B, 128)

    logits_pad, attention = _fused_call(transformer_input, cls_pad, man_pad,
                                        params)
    logits = logits_pad[:, :NUM_CLASSES]
    prediction = jnp.argmax(logits, axis=1)        # first-max, like torch
    loss = jnp.asarray(10000.0, dtype=jnp.float32)  # labels is None path
    return loss, prediction, attention


# ------------------------------- param setup ---------------------------------
def init_params(key):
    k_enc_w, k_enc_b, k_w1, k_b1, k_fc_w, k_fc_b = jax.random.split(key, 6)
    return {
        # synthetic encoder (stands in for the checkpoint transformer)
        "w_enc": 0.05 * jax.random.normal(k_enc_w, (H_TRANS, H_TRANS), jnp.float32),
        "b_enc": 0.05 * jax.random.normal(k_enc_b, (1, H_TRANS), jnp.float32),
        # dense layer 0 (nn.Linear(128, 64)), stored [in, out]
        "w1": 0.05 * jax.random.normal(k_w1, (D0, D1), jnp.float32),
        "b1": 0.05 * jax.random.normal(k_b1, (1, D1), jnp.float32),
        # BatchNorm1d(64) — PyTorch init defaults
        "bn_gamma": jnp.ones((1, D1), jnp.float32),
        "bn_beta": jnp.zeros((1, D1), jnp.float32),
        "bn_mean": jnp.zeros((1, D1), jnp.float32),
        "bn_var": jnp.ones((1, D1), jnp.float32),
        # final fc (nn.Linear(65, 4)), stored [in, out]
        "w_fc": 0.05 * jax.random.normal(k_fc_w, (D1 + 1, NUM_CLASSES), jnp.float32),
        "b_fc": 0.05 * jax.random.normal(k_fc_b, (1, NUM_CLASSES), jnp.float32),
    }


def prepare_fused_params(raw):
    """One-time prep: fold eval-mode BatchNorm into dense0 and zero-pad
    weights so every in-kernel operand is lane-dense (last dim 128)."""
    scale = raw["bn_gamma"] * jax.lax.rsqrt(raw["bn_var"] + BN_EPS)   # (1, D1)
    w1_folded = raw["w1"] * scale
    b1_folded = (raw["b1"] - raw["bn_mean"]) * scale + raw["bn_beta"]

    w_enc_pad = jnp.zeros((D0, D0), jnp.float32)
    w_enc_pad = w_enc_pad.at[:H_TRANS, :H_TRANS].set(raw["w_enc"])
    b_enc_pad = jnp.zeros((1, D0), jnp.float32).at[:, :H_TRANS].set(raw["b_enc"])

    w_fc_pad = jnp.zeros((D1 + 1, LOGIT_PAD), jnp.float32)
    w_fc_pad = w_fc_pad.at[:, :NUM_CLASSES].set(raw["w_fc"])
    b_fc_pad = jnp.zeros((1, LOGIT_PAD), jnp.float32).at[:, :NUM_CLASSES].set(raw["b_fc"])

    return {
        "w_enc_pad": w_enc_pad, "b_enc_pad": b_enc_pad,
        "w1_folded": w1_folded, "b1_folded": b1_folded,
        "w_fc_pad": w_fc_pad, "b_fc_pad": b_fc_pad,
    }


if __name__ == "__main__":
    key = jax.random.PRNGKey(0)
    k_params, k_pair, k_claim, k_manual = jax.random.split(key, 4)

    params = prepare_fused_params(init_params(k_params))

    transformer_input = jax.random.normal(k_pair, (BATCH, SEQ, H_TRANS), jnp.float32)
    claim_input = jax.random.normal(k_claim, (BATCH, SEQ, H_TRANS), jnp.float32)
    manual_features = jax.random.normal(k_manual, (BATCH, EXTRA_FEATURES), jnp.float32)

    loss, prediction, attention = transformer_with_extra_features_forward(
        params, transformer_input, claim_input, manual_features)

    jax.block_until_ready((loss, prediction, attention))
    assert prediction.shape == (BATCH,)
    assert attention.shape == (BATCH, SEQ, SEQ)
    print("KERNEL_OK")
</pallas_src>

<mosaic_0001>
module attributes {stable_mosaic.version = 11 : i64} {
  func.func @_fused_kernel(%arg0: memref<2x8x96xf32, #tpu.memory_space<vmem>>, %arg1: memref<4x128xf32, #tpu.memory_space<vmem>>, %arg2: memref<2x128xf32, #tpu.memory_space<vmem>>, %arg3: memref<128x128xf32, #tpu.memory_space<vmem>>, %arg4: memref<1x128xf32, #tpu.memory_space<vmem>>, %arg5: memref<128x64xf32, #tpu.memory_space<vmem>>, %arg6: memref<1x64xf32, #tpu.memory_space<vmem>>, %arg7: memref<65x128xf32, #tpu.memory_space<vmem>>, %arg8: memref<1x128xf32, #tpu.memory_space<vmem>>, %arg9: memref<2x128xf32, #tpu.memory_space<vmem>>, %arg10: memref<2x8x8xf32, #tpu.memory_space<vmem>>) attributes {dimension_semantics = [], scalar_prefetch = 0 : i64, scratch_operands = 0 : i64, tpu.core_type = #tpu.core_type<tc>} {
    %c0 = arith.constant 0 : index
    %c0_0 = arith.constant 0 : index
    %0 = vector.load %arg1[%c0, %c0_0] : memref<4x128xf32, #tpu.memory_space<vmem>>, vector<4x128xf32>
    %c0_1 = arith.constant 0 : index
    %c0_2 = arith.constant 0 : index
    %1 = vector.load %arg3[%c0_1, %c0_2] : memref<128x128xf32, #tpu.memory_space<vmem>>, vector<128x128xf32>
    %cst = arith.constant dense<0.000000e+00> : vector<4x128xf32>
    %2 = tpu.matmul %0, %1, %cst {dimension_numbers = #tpu.dot_dimension_numbers<[1], [0], [0], [1], [0, 0, 1, 1], [], []>} : vector<4x128xf32>, vector<128x128xf32>, vector<4x128xf32> -> vector<4x128xf32>
    %c0_3 = arith.constant 0 : index
    %c0_4 = arith.constant 0 : index
    %3 = vector.load %arg4[%c0_3, %c0_4] : memref<1x128xf32, #tpu.memory_space<vmem>>, vector<1x128xf32>
    %4 = vector.broadcast %3 : vector<1x128xf32> to vector<4x128xf32>
    %5 = arith.addf %2, %4 : vector<4x128xf32>
    %6 = math.tanh %5 : vector<4x128xf32>
    %7 = vector.extract_strided_slice %6 {offsets = [0, 0], sizes = [2, 128], strides = [1, 1]} : vector<4x128xf32> to vector<2x128xf32>
    %8 = vector.extract_strided_slice %6 {offsets = [2, 0], sizes = [2, 128], strides = [1, 1]} : vector<4x128xf32> to vector<2x128xf32>
    %c0_5 = arith.constant 0 : index
    %c0_6 = arith.constant 0 : index
    %c0_7 = arith.constant 0 : index
    %9 = vector.load %arg0[%c0_5, %c0_6, %c0_7] : memref<2x8x96xf32, #tpu.memory_space<vmem>>, vector<2x8x96xf32>
    "tpu.trace_start"() <{level = 10 : i32, message = "bsd,btd->bst"}> : () -> ()
    %cst_8 = arith.constant dense<0.000000e+00> : vector<2x8x8xf32>
    %10 = tpu.matmul %9, %9, %cst_8 {dimension_numbers = #tpu.dot_dimension_numbers<[2], [2], [1], [1], [0, 0, 0, 1, 1, 1], [0], [0]>} : vector<2x8x96xf32>, vector<2x8x96xf32>, vector<2x8x8xf32> -> vector<2x8x8xf32>
    "tpu.trace_stop"() : () -> ()
    %cst_9 = arith.constant 0.102062076 : f32
    %11 = vector.broadcast %cst_9 : f32 to vector<2x8x8xf32>
    %12 = arith.mulf %10, %11 : vector<2x8x8xf32>
    %cst_10 = arith.constant dense<0xFF800000> : vector<2x8xf32>
    %13 = vector.multi_reduction <maximumf>, %12, %cst_10 [2] : vector<2x8x8xf32> to vector<2x8xf32>
    %14 = vector.shape_cast %13 : vector<2x8xf32> to vector<2x8x1xf32>
    %15 = vector.broadcast %14 : vector<2x8x1xf32> to vector<2x8x8xf32>
    %16 = arith.subf %12, %15 : vector<2x8x8xf32>
    %17 = math.exp %16 : vector<2x8x8xf32>
    %cst_11 = arith.constant dense<0.000000e+00> : vector<2x8xf32>
    %18 = vector.multi_reduction <add>, %17, %cst_11 [2] : vector<2x8x8xf32> to vector<2x8xf32>
    %19 = vector.shape_cast %18 : vector<2x8xf32> to vector<2x8x1xf32>
    %20 = vector.broadcast %19 : vector<2x8x1xf32> to vector<2x8x8xf32>
    %21 = arith.divf %17, %20 : vector<2x8x8xf32>
    %c0_12 = arith.constant 0 : index
    %c0_13 = arith.constant 0 : index
    %c0_14 = arith.constant 0 : index
    %22 = vector.load %arg10[%c0_12, %c0_13, %c0_14] : memref<2x8x8xf32, #tpu.memory_space<vmem>>, vector<2x8x8xf32>
    tpu.vector_store %arg10[%c0_12, %c0_13, %c0_14], %21 {strides = array<i32>} : memref<2x8x8xf32, #tpu.memory_space<vmem>>, vector<2x8x8xf32>,
    %c0_15 = arith.constant 0 : index
    %c0_16 = arith.constant 0 : index
    %23 = vector.load %arg2[%c0_15, %c0_16] : memref<2x128xf32, #tpu.memory_space<vmem>>, vector<2x128xf32>
    %24 = arith.addf %7, %23 : vector<2x128xf32>
    %c0_17 = arith.constant 0 : index
    %c0_18 = arith.constant 0 : index
    %25 = vector.load %arg5[%c0_17, %c0_18] : memref<128x64xf32, #tpu.memory_space<vmem>>, vector<128x64xf32>
    %cst_19 = arith.constant dense<0.000000e+00> : vector<2x64xf32>
    %26 = tpu.matmul %24, %25, %cst_19 {dimension_numbers = #tpu.dot_dimension_numbers<[1], [0], [0], [1], [0, 0, 1, 1], [], []>} : vector<2x128xf32>, vector<128x64xf32>, vector<2x64xf32> -> vector<2x64xf32>
    %c0_20 = arith.constant 0 : index
    %c0_21 = arith.constant 0 : index
    %27 = vector.load %arg6[%c0_20, %c0_21] : memref<1x64xf32, #tpu.memory_space<vmem>>, vector<1x64xf32>
    %28 = vector.broadcast %27 : vector<1x64xf32> to vector<2x64xf32>
    %29 = arith.addf %26, %28 : vector<2x64xf32>
    %cst_22 = arith.constant 0.000000e+00 : f32
    %30 = vector.broadcast %cst_22 : f32 to vector<2x64xf32>
    %31 = arith.maximumf %29, %30 : vector<2x64xf32>
    %32 = arith.mulf %7, %8 : vector<2x128xf32>
    %cst_23 = arith.constant dense<0.000000e+00> : vector<2xf32>
    %33 = vector.multi_reduction <add>, %32, %cst_23 [1] : vector<2x128xf32> to vector<2xf32>
    %34 = vector.shape_cast %33 : vector<2xf32> to vector<2x1xf32>
    %35 = arith.mulf %7, %7 : vector<2x128xf32>
    %cst_24 = arith.constant dense<0.000000e+00> : vector<2xf32>
    %36 = vector.multi_reduction <add>, %35, %cst_24 [1] : vector<2x128xf32> to vector<2xf32>
    %37 = vector.shape_cast %36 : vector<2xf32> to vector<2x1xf32>
    %38 = math.sqrt %37 : vector<2x1xf32>
    %39 = arith.mulf %8, %8 : vector<2x128xf32>
    %cst_25 = arith.constant dense<0.000000e+00> : vector<2xf32>
    %40 = vector.multi_reduction <add>, %39, %cst_25 [1] : vector<2x128xf32> to vector<2xf32>
    %41 = vector.shape_cast %40 : vector<2xf32> to vector<2x1xf32>
    %42 = math.sqrt %41 : vector<2x1xf32>
    %43 = arith.mulf %38, %42 : vector<2x1xf32>
    %cst_26 = arith.constant 9.99999993E-9 : f32
    %44 = vector.broadcast %cst_26 : f32 to vector<2x1xf32>
    %45 = arith.maximumf %43, %44 : vector<2x1xf32>
    %46 = arith.divf %34, %45 : vector<2x1xf32>
    %c0_27 = arith.constant 0 : index
    %c0_28 = arith.constant 0 : index
    %47 = vector.load %arg7[%c0_27, %c0_28] : memref<65x128xf32, #tpu.memory_space<vmem>>, vector<65x128xf32>
    %48 = vector.extract_strided_slice %47 {offsets = [0, 0], sizes = [64, 128], strides = [1, 1]} : vector<65x128xf32> to vector<64x128xf32>
    %cst_29 = arith.constant dense<0.000000e+00> : vector<2x128xf32>
    %49 = tpu.matmul %31, %48, %cst_29 {dimension_numbers = #tpu.dot_dimension_numbers<[1], [0], [0], [1], [0, 0, 1, 1], [], []>} : vector<2x64xf32>, vector<64x128xf32>, vector<2x128xf32> -> vector<2x128xf32>
    %50 = vector.extract_strided_slice %47 {offsets = [64, 0], sizes = [1, 128], strides = [1, 1]} : vector<65x128xf32> to vector<1x128xf32>
    %51 = vector.broadcast %46 : vector<2x1xf32> to vector<2x128xf32>
    %52 = vector.broadcast %50 : vector<1x128xf32> to vector<2x128xf32>
    %53 = arith.mulf %51, %52 : vector<2x128xf32>
    %54 = arith.addf %49, %53 : vector<2x128xf32>
    %c0_30 = arith.constant 0 : index
    %c0_31 = arith.constant 0 : index
    %55 = vector.load %arg8[%c0_30, %c0_31] : memref<1x128xf32, #tpu.memory_space<vmem>>, vector<1x128xf32>
    %56 = vector.broadcast %55 : vector<1x128xf32> to vector<2x128xf32>
    %57 = arith.addf %54, %56 : vector<2x128xf32>
    %c0_32 = arith.constant 0 : index
    %c0_33 = arith.constant 0 : index
    %58 = vector.load %arg9[%c0_32, %c0_33] : memref<2x128xf32, #tpu.memory_space<vmem>>, vector<2x128xf32>
    tpu.vector_store %arg9[%c0_32, %c0_33], %57 {strides = array<i32>} : memref<2x128xf32, #tpu.memory_space<vmem>>, vector<2x128xf32>,
    return
  }
}

</mosaic_0001>

<llo_original>
// kernel: transformer_with_extra_features_forward.1
$region0: #{transformer_with_extra_features_forward.1}
  #allocation0 [shape = 'u32[]', space=smem, size = 0x4, offset = 0x4, fixed_abs, tag = 'smem constant byte address 0x4 - core index']
  #allocation1 [shape = 'u32[144,128]{1,0:T(1,128)}', space=vmem, size = 0x12000, scoped, tag = 'internal scratch']
  %s0 = inlined_call_operand.vmem [shape: f32[2,8,96], index: 0, kind: input, shape index: {}]
  %s1 = inlined_call_operand.vmem [shape: f32[4,128], index: 1, kind: input, shape index: {}]
  %s2 = inlined_call_operand.vmem [shape: f32[2,128], index: 2, kind: input, shape index: {}]
  %s3 = inlined_call_operand.vmem [shape: f32[128,128], index: 3, kind: input, shape index: {}]
  %s4 = inlined_call_operand.hbm [shape: f32[1,128], index: 4, kind: input, shape index: {}]
  %s5 = inlined_call_operand.vmem [shape: f32[128,64], index: 5, kind: input, shape index: {}]
  %s6 = inlined_call_operand.vmem [shape: f32[1,64], index: 6, kind: input, shape index: {}]
  %s7 = inlined_call_operand.vmem [shape: f32[65,128], index: 7, kind: input, shape index: {}]
  %s8 = inlined_call_operand.hbm [shape: f32[1,128], index: 8, kind: input, shape index: {}]
  %s9 = inlined_call_operand.vmem [shape: f32[2,128], index: 9, kind: output, shape index: {0}]
  %s10 = inlined_call_operand.hbm [shape: f32[2,8,8], index: 10, kind: output, shape index: {1}]
  %11 = xla_tuple %s9, %s10
  %s12 = sld [smem:[#allocation0]]
  $region62: #{transformer_with_extra_features_forward.1} parent=0
    _
  %s14 = ssub.s32 1, %s12
  %s15 = scalar_select 0, %s14, %s12
  $region1: #{transformer_with_extra_features_forward.1} parent=0
    #allocation2 [shape = 'u8[512]{0}', space=vmem, size = 0x400, scoped, tag = 'input window, operand 4, single buffered']
    #allocation3 [shape = 's32[1]{0}', space=sflag, size = 0x4, scoped, tag = 'scoped memory for transformer_with_extra_features_forward.1']
    #allocation4 [shape = 's32[1]{0}', space=sflag, size = 0x4, scoped, tag = 'scoped memory for transformer_with_extra_features_forward.1']
    #allocation5 [shape = 'u8[512]{0}', space=vmem, size = 0x400, scoped, tag = 'input window, operand 8, single buffered']
    #allocation6 [shape = 's32[1]{0}', space=sflag, size = 0x4, scoped, tag = 'scoped memory for transformer_with_extra_features_forward.1']
    #allocation7 [shape = 'u8[8192]{0}', space=vmem, size = 0x2000, scoped, tag = 'output window, operand 1, single buffered']
    %16 = vsyncpa [#allocation3], 0
    %17 = vsyncpa [#allocation6], 0
    %18 = vsyncpa [#allocation4], 0
    // Predicated region
    $region2: #{transformer_with_extra_features_forward.1} parent=1 // pred_check
      _
    $region3: #{transformer_with_extra_features_forward.1} parent=1 // pred_check_branch
      %20 = sbr.rel (0) target = $region5
    $region4: #{transformer_with_extra_features_forward.1} parent=1 // pred_region
      _
    $region5: #{transformer_with_extra_features_forward.1} parent=1 // pred_fallthru
      _
    // Predicated region
    $region6: #{transformer_with_extra_features_forward.1} parent=1 // pred_check
      _
    $region7: #{transformer_with_extra_features_forward.1} parent=1 // pred_check_branch
      %22 = sbr.rel (0) target = $region9
    $region8: #{transformer_with_extra_features_forward.1} parent=1 // pred_region
      _
    $region9: #{transformer_with_extra_features_forward.1} parent=1 // pred_fallthru
      _
    // Predicated region
    $region10: #{transformer_with_extra_features_forward.1} parent=1 // pred_check
      _
    $region11: #{transformer_with_extra_features_forward.1} parent=1 // pred_check_branch
      %24 = sbr.rel (0) target = $region13
    $region12: #{transformer_with_extra_features_forward.1} parent=1 // pred_region
      _
    $region13: #{transformer_with_extra_features_forward.1} parent=1 // pred_fallthru
      _
    // Predicated region
    $region14: #{transformer_with_extra_features_forward.1} parent=1 // pred_check
      _
    $region15: #{transformer_with_extra_features_forward.1} parent=1 // pred_check_branch
      %26 = sbr.rel (0) target = $region17
    $region16: #{transformer_with_extra_features_forward.1} parent=1 // pred_region
      _
    $region17: #{transformer_with_extra_features_forward.1} parent=1 // pred_fallthru
      _
    // Predicated region
    $region18: #{transformer_with_extra_features_forward.1} parent=1 // pred_check
      _
    $region19: #{transformer_with_extra_features_forward.1} parent=1 // pred_check_branch
      %28 = sbr.rel (0) target = $region21
    $region20: #{transformer_with_extra_features_forward.1} parent=1 // pred_region
      %s30 = ssub.s32 16, 16
      %31 = vsyncadd [#allocation3], %s30
      %s33 = sshll.u32 [#allocation2], 4
      %s34 = int_to_ptr.vmem [resolvable:$true] %s33
      %36 = dma.hbm_to_vmem [thread:$0]  %s4, 16, %s34, [#allocation3]
    $region21: #{transformer_with_extra_features_forward.1} parent=1 // pred_fallthru
      _
    // Predicated region
    $region22: #{transformer_with_extra_features_forward.1} parent=1 // pred_check
      _
    $region23: #{transformer_with_extra_features_forward.1} parent=1 // pred_check_branch
      %38 = sbr.rel (0) target = $region25
    $region24: #{transformer_with_extra_features_forward.1} parent=1 // pred_region
      _
    $region25: #{transformer_with_extra_features_forward.1} parent=1 // pred_fallthru
      _
    // Predicated region
    $region26: #{transformer_with_extra_features_forward.1} parent=1 // pred_check
      _
    $region27: #{transformer_with_extra_features_forward.1} parent=1 // pred_check_branch
      %40 = sbr.rel (0) target = $region29
    $region28: #{transformer_with_extra_features_forward.1} parent=1 // pred_region
      _
    $region29: #{transformer_with_extra_features_forward.1} parent=1 // pred_fallthru
      _
    // Predicated region
    $region30: #{transformer_with_extra_features_forward.1} parent=1 // pred_check
      _
    $region31: #{transformer_with_extra_features_forward.1} parent=1 // pred_check_branch
      %42 = sbr.rel (0) target = $region33
    $region32: #{transformer_with_extra_features_forward.1} parent=1 // pred_region
      _
    $region33: #{transformer_with_extra_features_forward.1} parent=1 // pred_fallthru
      _
    // Predicated region
    $region34: #{transformer_with_extra_features_forward.1} parent=1 // pred_check
      _
    $region35: #{transformer_with_extra_features_forward.1} parent=1 // pred_check_branch
      %44 = sbr.rel (0) target = $region37
    $region36: #{transformer_with_extra_features_forward.1} parent=1 // pred_region
      %s46 = ssub.s32 16, 16
      %47 = vsyncadd [#allocation6], %s46
      %s49 = sshll.u32 [#allocation5], 4
      %s50 = int_to_ptr.vmem [resolvable:$true] %s49
      %52 = dma.hbm_to_vmem [thread:$0]  %s8, 16, %s50, [#allocation6]
    $region37: #{transformer_with_extra_features_forward.1} parent=1 // pred_fallthru
      _
    // Predicated region
    $region38: #{transformer_with_extra_features_forward.1} parent=1 // pred_check
      _
    $region39: #{transformer_with_extra_features_forward.1} parent=1 // pred_check_branch
      %54 = sbr.rel (0) target = $region41
    $region40: #{transformer_with_extra_features_forward.1} parent=1 // pred_region
      %55 = dma.done [#allocation3], 16
    $region41: #{transformer_with_extra_features_forward.1} parent=1 // pred_fallthru
      _
    // Predicated region
    $region42: #{transformer_with_extra_features_forward.1} parent=1 // pred_check
      _
    $region43: #{transformer_with_extra_features_forward.1} parent=1 // pred_check_branch
      %57 = sbr.rel (0) target = $region45
    $region44: #{transformer_with_extra_features_forward.1} parent=1 // pred_region
      %58 = dma.done [#allocation6], 16
    $region45: #{transformer_with_extra_features_forward.1} parent=1 // pred_fallthru
      _
    %v59 = vld [vmem:[%s1] sm:$0xf]
    %v60 = vld [vmem:[%s3] sm:$0xff]
    %v61 = vld [vmem:[%s3 + $0x8] sm:$0xff]
    %v62 = vld [vmem:[%s3 + $0x10] sm:$0xff]
    %v63 = vld [vmem:[%s3 + $0x18] sm:$0xff]
    %v64 = vld [vmem:[%s3 + $0x20] sm:$0xff]
    %v65 = vld [vmem:[%s3 + $0x28] sm:$0xff]
    %v66 = vld [vmem:[%s3 + $0x30] sm:$0xff]
    %v67 = vld [vmem:[%s3 + $0x38] sm:$0xff]
    %v68 = vld [vmem:[%s3 + $0x40] sm:$0xff]
    %v69 = vld [vmem:[%s3 + $0x48] sm:$0xff]
    %v70 = vld [vmem:[%s3 + $0x50] sm:$0xff]
    %v71 = vld [vmem:[%s3 + $0x58] sm:$0xff]
    %v72 = vld [vmem:[%s3 + $0x60] sm:$0xff]
    %v73 = vld [vmem:[%s3 + $0x68] sm:$0xff]
    %v74 = vld [vmem:[%s3 + $0x70] sm:$0xff]
    %v75 = vld [vmem:[%s3 + $0x78] sm:$0xff]
    %v76 = vld [vmem:[#allocation2] sm:$0x1]
    %v78 = vlaneseq
    %v79 = vshrl.u32 %v78, 7
    %v80 = vsub.s32 0, %v79
    %v81 = vrot.slane %v76, %v80
    %83 = vmatprep.subr.mxu0 0.0
    %84 = vmatpush1.msra.mxu0 %v75
    %85 = vmatprep.subr.mxu0 0.0
    %86 = vmatpush1.msra.mxu0 %v74
    %87 = vmatprep.subr.mxu0 0.0
    %88 = vmatpush1.msra.mxu0 %v73
    %89 = vmatprep.subr.mxu0 0.0
    %90 = vmatpush1.msra.mxu0 %v72
    %91 = vmatprep.subr.mxu0 0.0
    %92 = vmatpush1.msra.mxu0 %v71
    %93 = vmatprep.subr.mxu0 0.0
    %94 = vmatpush1.msra.mxu0 %v70
    %95 = vmatprep.subr.mxu0 0.0
    %96 = vmatpush1.msra.mxu0 %v69
    %97 = vmatprep.subr.mxu0 0.0
    %98 = vmatpush1.msra.mxu0 %v68
    %99 = vmatprep.subr.mxu0 0.0
    %100 = vmatpush1.msra.mxu0 %v67
    %101 = vmatprep.subr.mxu0 0.0
    %102 = vmatpush1.msra.mxu0 %v66
    %103 = vmatprep.subr.mxu0 0.0
    %104 = vmatpush1.msra.mxu0 %v65
    %105 = vmatprep.subr.mxu0 0.0
    %106 = vmatpush1.msra.mxu0 %v64
    %107 = vmatprep.subr.mxu0 0.0
    %108 = vmatpush1.msra.mxu0 %v63
    %109 = vmatprep.subr.mxu0 0.0
    %110 = vmatpush1.msra.mxu0 %v62
    %111 = vmatprep.subr.mxu0 0.0
    %112 = vmatpush1.msra.mxu0 %v61
    %113 = vmatprep.subr.mxu0 0.0
    %114 = vmatpush1.msra.mxu0 %v60
    %115 = vmatprep.subr.mxu0 0.0
    %116 = vmatpush2.msra.mxu0 0.0
    %117 = vmatprep.subr.mxu0 0.0
    %118 = vmatpush2.msra.mxu0 0.0
    %119 = vmatprep.subr.mxu0 0.0
    %120 = vmatpush2.msra.mxu0 0.0
    %121 = vmatprep.subr.mxu0 0.0
    %122 = vmatpush2.msra.mxu0 0.0
    %123 = vmatprep.subr.mxu0 0.0
    %124 = vmatpush2.msra.mxu0 0.0
    %125 = vmatprep.subr.mxu0 0.0
    %126 = vmatpush2.msra.mxu0 0.0
    %127 = vmatprep.subr.mxu0 0.0
    %128 = vmatpush2.msra.mxu0 0.0
    %129 = vmatprep.subr.mxu0 0.0
    %130 = vmatpush2.msra.mxu0 0.0
    %131 = vmatprep.subr.mxu0 0.0
    %132 = vmatpush2.msra.mxu0 0.0
    %133 = vmatprep.subr.mxu0 0.0
    %134 = vmatpush2.msra.mxu0 0.0
    %135 = vmatprep.subr.mxu0 0.0
    %136 = vmatpush2.msra.mxu0 0.0
    %137 = vmatprep.subr.mxu0 0.0
    %138 = vmatpush2.msra.mxu0 0.0
    %139 = vmatprep.subr.mxu0 0.0
    %140 = vmatpush2.msra.mxu0 0.0
    %141 = vmatprep.subr.mxu0 0.0
    %142 = vmatpush2.msra.mxu0 0.0
    %143 = vmatprep.subr.mxu0 0.0
    %144 = vmatpush2.msra.mxu0 0.0
    %145 = vmatprep.subr.mxu0 0.0
    %146 = vmatpush2.msra.mxu0 0.0
    %147 = vmatprep.mubr.f32.mxu0 0.0
    %148 = vmatmul.mubr.f32.gmra.mxu0 %v59
    %v149 = vpop.f32.mrf.mxu0
    %v150 = vadd.f32 %v81, %v149
    %v151 = vpop.f32.mrf.mxu0
    %152 = vdwg.mxu0
    %v153 = vtanh.pop %v150
    %v154 = vld [vmem:[%s0] sm:$0xff]
    %v155 = vld [vmem:[%s0 + $0x8] sm:$0xff]
    %vm156 = vcmask 785408
    %v158 = vsel %vm156, %v154, 0
    %160 = vmatprep.subr.mxu0 0.0
    %161 = vmatpush1.xpose.msra.mxu0 0.0
    %162 = vmatprep.subr.mxu0 0.0
    %163 = vmatpush1.xpose.msra.mxu0 0.0
    %164 = vmatprep.subr.mxu0 0.0
    %165 = vmatpush1.xpose.msra.mxu0 0.0
    %166 = vmatprep.subr.mxu0 0.0
    %167 = vmatpush1.xpose.msra.mxu0 0.0
    %168 = vmatprep.subr.mxu0 0.0
    %169 = vmatpush1.xpose.msra.mxu0 0.0
    %170 = vmatprep.subr.mxu0 0.0
    %171 = vmatpush1.xpose.msra.mxu0 0.0
    %172 = vmatprep.subr.mxu0 0.0
    %173 = vmatpush1.xpose.msra.mxu0 0.0
    %174 = vmatprep.subr.mxu0 0.0
    %175 = vmatpush1.xpose.msra.mxu0 0.0
    %176 = vmatprep.subr.mxu0 0.0
    %177 = vmatpush1.xpose.msra.mxu0 0.0
    %178 = vmatprep.subr.mxu0 0.0
    %179 = vmatpush1.xpose.msra.mxu0 0.0
    %180 = vmatprep.subr.mxu0 0.0
    %181 = vmatpush1.xpose.msra.mxu0 0.0
    %182 = vmatprep.subr.mxu0 0.0
    %183 = vmatpush1.xpose.msra.mxu0 0.0
    %184 = vmatprep.subr.mxu0 0.0
    %185 = vmatpush1.xpose.msra.mxu0 0.0
    %186 = vmatprep.subr.mxu0 0.0
    %187 = vmatpush1.xpose.msra.mxu0 0.0
    %188 = vmatprep.subr.mxu0 0.0
    %189 = vmatpush1.xpose.msra.mxu0 0.0
    %190 = vmatprep.subr.mxu0 0.0
    %191 = vmatpush1.xpose.msra.mxu0 %v158
    %192 = vmatprep.subr.mxu0 0.0
    %193 = vmatpush2.xpose.msra.mxu0 0.0
    %194 = vmatprep.subr.mxu0 0.0
    %195 = vmatpush2.xpose.msra.mxu0 0.0
    %196 = vmatprep.subr.mxu0 0.0
    %197 = vmatpush2.xpose.msra.mxu0 0.0
    %198 = vmatprep.subr.mxu0 0.0
    %199 = vmatpush2.xpose.msra.mxu0 0.0
    %200 = vmatprep.subr.mxu0 0.0
    %201 = vmatpush2.xpose.msra.mxu0 0.0
    %202 = vmatprep.subr.mxu0 0.0
    %203 = vmatpush2.xpose.msra.mxu0 0.0
    %204 = vmatprep.subr.mxu0 0.0
    %205 = vmatpush2.xpose.msra.mxu0 0.0
    %206 = vmatprep.subr.mxu0 0.0
    %207 = vmatpush2.xpose.msra.mxu0 0.0
    %208 = vmatprep.subr.mxu0 0.0
    %209 = vmatpush2.xpose.msra.mxu0 0.0
    %210 = vmatprep.subr.mxu0 0.0
    %211 = vmatpush2.xpose.msra.mxu0 0.0
    %212 = vmatprep.subr.mxu0 0.0
    %213 = vmatpush2.xpose.msra.mxu0 0.0
    %214 = vmatprep.subr.mxu0 0.0
    %215 = vmatpush2.xpose.msra.mxu0 0.0
    %216 = vmatprep.subr.mxu0 0.0
    %217 = vmatpush2.xpose.msra.mxu0 0.0
    %218 = vmatprep.subr.mxu0 0.0
    %219 = vmatpush2.xpose.msra.mxu0 0.0
    %220 = vmatprep.subr.mxu0 0.0
    %221 = vmatpush2.xpose.msra.mxu0 0.0
    %222 = vmatprep.subr.mxu0 0.0
    %223 = vmatpush2.xpose.msra.mxu0 0.0
    %224 = vmatprep.mubr.f32.mxu0 0.0
    %225 = vmatmul.mubr.f32.gmra.mxu0 %v158
    %v226 = vpop.f32.mrf.mxu0
    %v227 = vadd.f32 0.0, %v226
    %v228 = vpop.f32.mrf.mxu0
    %229 = vdwg.mxu0
    %v231 = vsel %vm156, %v155, 0
    %233 = vmatprep.subr.mxu0 0.0
    %234 = vmatpush1.xpose.msra.mxu0 0.0
    %235 = vmatprep.subr.mxu0 0.0
    %236 = vmatpush1.xpose.msra.mxu0 0.0
    %237 = vmatprep.subr.mxu0 0.0
    %238 = vmatpush1.xpose.msra.mxu0 0.0
    %239 = vmatprep.subr.mxu0 0.0
    %240 = vmatpush1.xpose.msra.mxu0 0.0
    %241 = vmatprep.subr.mxu0 0.0
    %242 = vmatpush1.xpose.msra.mxu0 0.0
    %243 = vmatprep.subr.mxu0 0.0
    %244 = vmatpush1.xpose.msra.mxu0 0.0
    %245 = vmatprep.subr.mxu0 0.0
    %246 = vmatpush1.xpose.msra.mxu0 0.0
    %247 = vmatprep.subr.mxu0 0.0
    %248 = vmatpush1.xpose.msra.mxu0 0.0
    %249 = vmatprep.subr.mxu0 0.0
    %250 = vmatpush1.xpose.msra.mxu0 0.0
    %251 = vmatprep.subr.mxu0 0.0
    %252 = vmatpush1.xpose.msra.mxu0 0.0
    %253 = vmatprep.subr.mxu0 0.0
    %254 = vmatpush1.xpose.msra.mxu0 0.0
    %255 = vmatprep.subr.mxu0 0.0
    %256 = vmatpush1.xpose.msra.mxu0 0.0
    %257 = vmatprep.subr.mxu0 0.0
    %258 = vmatpush1.xpose.msra.mxu0 0.0
    %259 = vmatprep.subr.mxu0 0.0
    %260 = vmatpush1.xpose.msra.mxu0 0.0
    %261 = vmatprep.subr.mxu0 0.0
    %262 = vmatpush1.xpose.msra.mxu0 0.0
    %263 = vmatprep.subr.mxu0 0.0
    %264 = vmatpush1.xpose.msra.mxu0 %v231
    %265 = vmatprep.subr.mxu0 0.0
    %266 = vmatpush2.xpose.msra.mxu0 0.0
    %267 = vmatprep.subr.mxu0 0.0
    %268 = vmatpush2.xpose.msra.mxu0 0.0
    %269 = vmatprep.subr.mxu0 0.0
    %270 = vmatpush2.xpose.msra.mxu0 0.0
    %271 = vmatprep.subr.mxu0 0.0
    %272 = vmatpush2.xpose.msra.mxu0 0.0
    %273 = vmatprep.subr.mxu0 0.0
    %274 = vmatpush2.xpose.msra.mxu0 0.0
    %275 = vmatprep.subr.mxu0 0.0
    %276 = vmatpush2.xpose.msra.mxu0 0.0
    %277 = vmatprep.subr.mxu0 0.0
    %278 = vmatpush2.xpose.msra.mxu0 0.0
    %279 = vmatprep.subr.mxu0 0.0
    %280 = vmatpush2.xpose.msra.mxu0 0.0
    %281 = vmatprep.subr.mxu0 0.0
    %282 = vmatpush2.xpose.msra.mxu0 0.0
    %283 = vmatprep.subr.mxu0 0.0
    %284 = vmatpush2.xpose.msra.mxu0 0.0
    %285 = vmatprep.subr.mxu0 0.0
    %286 = vmatpush2.xpose.msra.mxu0 0.0
    %287 = vmatprep.subr.mxu0 0.0
    %288 = vmatpush2.xpose.msra.mxu0 0.0
    %289 = vmatprep.subr.mxu0 0.0
    %290 = vmatpush2.xpose.msra.mxu0 0.0
    %291 = vmatprep.subr.mxu0 0.0
    %292 = vmatpush2.xpose.msra.mxu0 0.0
    %293 = vmatprep.subr.mxu0 0.0
    %294 = vmatpush2.xpose.msra.mxu0 0.0
    %295 = vmatprep.subr.mxu0 0.0
    %296 = vmatpush2.xpose.msra.mxu0 0.0
    %297 = vmatprep.mubr.f32.mxu0 0.0
    %298 = vmatmul.mubr.f32.gmra.mxu0 %v231
    %v299 = vpop.f32.mrf.mxu0
    %v300 = vadd.f32 0.0, %v299
    %v301 = vpop.f32.mrf.mxu0
    %302 = vdwg.mxu0
    %v303 = vmul.f32 %v227, 0.10206208
    %v304 = vmul.f32 %v300, 0.10206208
    %vm305 = vcmask 64512
    %v306 = vsel %vm305, %v303, -inf
    %307 = vmax.xlane.f32.xlu0 %v306
    %v308 = vpop.xlane.xlu0 %307
    %v309 = vsel %vm305, %v304, -inf
    %310 = vmax.xlane.f32.xlu0 %v309
    %v311 = vpop.xlane.xlu0 %310
    %v312 = vsub.f32 %v303, %v308
    %v313 = vsub.f32 %v304, %v311
    %v314 = vmul.f32 %v312, 1.442695
    %v315 = vpow.pop %v314
    %v316 = vmul.f32 %v313, 1.442695
    %v317 = vpow.pop %v316
    %v318 = vsel %vm305, %v315, 0.0
    %319 = vadd.xlane.f32.xlu0 %v318
    %v320 = vpop.xlane.xlu0 %319
    %v321 = vsel %vm305, %v317, 0.0
    %322 = vadd.xlane.f32.xlu0 %v321
    %v323 = vpop.xlane.xlu0 %322
    %v324 = vrcp.pop %v320
    %v325 = vmul.f32 %v315, %v324
    %v326 = vrcp.pop %v323
    %v327 = vmul.f32 %v317, %v326
    %328 = vst.msk [vmem:[#allocation7] sm:$0xff] %vm305, %v325
    %329 = vst.msk [vmem:[#allocation7 + $0x8] sm:$0xff] %vm305, %v327
    %v330 = vld [vmem:[%s2] sm:$0x3]
    %v331 = vadd.f32 %v153, %v330
    %v332 = vld [vmem:[%s5] sm:$0xff]
    %v333 = vld [vmem:[%s5 + $0x8] sm:$0xff]
    %v334 = vld [vmem:[%s5 + $0x10] sm:$0xff]
    %v335 = vld [vmem:[%s5 + $0x18] sm:$0xff]
    %v336 = vld [vmem:[%s5 + $0x20] sm:$0xff]
    %v337 = vld [vmem:[%s5 + $0x28] sm:$0xff]
    %v338 = vld [vmem:[%s5 + $0x30] sm:$0xff]
    %v339 = vld [vmem:[%s5 + $0x38] sm:$0xff]
    %v340 = vld [vmem:[%s5 + $0x40] sm:$0xff]
    %v341 = vld [vmem:[%s5 + $0x48] sm:$0xff]
    %v342 = vld [vmem:[%s5 + $0x50] sm:$0xff]
    %v343 = vld [vmem:[%s5 + $0x58] sm:$0xff]
    %v344 = vld [vmem:[%s5 + $0x60] sm:$0xff]
    %v345 = vld [vmem:[%s5 + $0x68] sm:$0xff]
    %v346 = vld [vmem:[%s5 + $0x70] sm:$0xff]
    %v347 = vld [vmem:[%s5 + $0x78] sm:$0xff]
    %v348 = vld [vmem:[%s6] sm:$0x1]
    %v350 = vlaneseq
    %v351 = vshrl.u32 %v350, 7
    %v352 = vsub.s32 0, %v351
    %v353 = vrot.slane %v348, %v352
    %355 = vmatprep.subr.mxu0 0.0
    %356 = vmatpush1.msra.mxu0 %v347
    %357 = vmatprep.subr.mxu0 0.0
    %358 = vmatpush1.msra.mxu0 %v346
    %359 = vmatprep.subr.mxu0 0.0
    %360 = vmatpush1.msra.mxu0 %v345
    %361 = vmatprep.subr.mxu0 0.0
    %362 = vmatpush1.msra.mxu0 %v344
    %363 = vmatprep.subr.mxu0 0.0
    %364 = vmatpush1.msra.mxu0 %v343
    %365 = vmatprep.subr.mxu0 0.0
    %366 = vmatpush1.msra.mxu0 %v342
    %367 = vmatprep.subr.mxu0 0.0
    %368 = vmatpush1.msra.mxu0 %v341
    %369 = vmatprep.subr.mxu0 0.0
    %370 = vmatpush1.msra.mxu0 %v340
    %371 = vmatprep.subr.mxu0 0.0
    %372 = vmatpush1.msra.mxu0 %v339
    %373 = vmatprep.subr.mxu0 0.0
    %374 = vmatpush1.msra.mxu0 %v338
    %375 = vmatprep.subr.mxu0 0.0
    %376 = vmatpush1.msra.mxu0 %v337
    %377 = vmatprep.subr.mxu0 0.0
    %378 = vmatpush1.msra.mxu0 %v336
    %379 = vmatprep.subr.mxu0 0.0
    %380 = vmatpush1.msra.mxu0 %v335
    %381 = vmatprep.subr.mxu0 0.0
    %382 = vmatpush1.msra.mxu0 %v334
    %383 = vmatprep.subr.mxu0 0.0
    %384 = vmatpush1.msra.mxu0 %v333
    %385 = vmatprep.subr.mxu0 0.0
    %386 = vmatpush1.msra.mxu0 %v332
    %387 = vmatprep.subr.mxu0 0.0
    %388 = vmatpush2.msra.mxu0 0.0
    %389 = vmatprep.subr.mxu0 0.0
    %390 = vmatpush2.msra.mxu0 0.0
    %391 = vmatprep.subr.mxu0 0.0
    %392 = vmatpush2.msra.mxu0 0.0
    %393 = vmatprep.subr.mxu0 0.0
    %394 = vmatpush2.msra.mxu0 0.0
    %395 = vmatprep.subr.mxu0 0.0
    %396 = vmatpush2.msra.mxu0 0.0
    %397 = vmatprep.subr.mxu0 0.0
    %398 = vmatpush2.msra.mxu0 0.0
    %399 = vmatprep.subr.mxu0 0.0
    %400 = vmatpush2.msra.mxu0 0.0
    %401 = vmatprep.subr.mxu0 0.0
    %402 = vmatpush2.msra.mxu0 0.0
    %403 = vmatprep.subr.mxu0 0.0
    %404 = vmatpush2.msra.mxu0 0.0
    %405 = vmatprep.subr.mxu0 0.0
    %406 = vmatpush2.msra.mxu0 0.0
    %407 = vmatprep.subr.mxu0 0.0
    %408 = vmatpush2.msra.mxu0 0.0
    %409 = vmatprep.subr.mxu0 0.0
    %410 = vmatpush2.msra.mxu0 0.0
    %411 = vmatprep.subr.mxu0 0.0
    %412 = vmatpush2.msra.mxu0 0.0
    %413 = vmatprep.subr.mxu0 0.0
    %414 = vmatpush2.msra.mxu0 0.0
    %415 = vmatprep.subr.mxu0 0.0
    %416 = vmatpush2.msra.mxu0 0.0
    %417 = vmatprep.subr.mxu0 0.0
    %418 = vmatpush2.msra.mxu0 0.0
    %419 = vmatprep.mubr.f32.mxu0 0.0
    %420 = vmatmul.mubr.f32.gmra.mxu0 %v331
    %v421 = vpop.f32.mrf.mxu0
    %v422 = vadd.f32 %v353, %v421
    %v423 = vpop.f32.mrf.mxu0
    %424 = vdwg.mxu0
    %v425 = vmax.f32 %v422, 0.0
    %v427 = vrot.slane %v153, 2
    %v429 = vmul.f32 %v153, %v427
    %vm430 = vcmask 1041408
    %v431 = vsel %vm430, %v429, 0.0
    %432 = vadd.xlane.f32.xlu0 %v431
    %v433 = vpop.xlane.xlu0 %432
    %v434 = vmul.f32 %v153, %v153
    %v435 = vsel %vm430, %v434, 0.0
    %436 = vadd.xlane.f32.xlu0 %v435
    %v437 = vpop.xlane.xlu0 %436
    %v438 = vrsqrt.pop %v437
    %v439 = vmul.f32 %v437, %v438
    %vm440 = vcmp.eq.f32.partialorder %v437, inf
    %v441 = vsel %vm440, %v437, %v439
    %vm442 = vcmp.eq.f32.partialorder %v437, 0.0
    %v443 = vand.u32 %v437, 2147483648
    %v444 = vsel %vm442, %v443, %v441
    %vm445 = vcmask 1043458
    %v446 = vsel %vm445, %v434, 0.0
    %447 = vadd.xlane.f32.xlu0 %v446
    %v448 = vpop.xlane.xlu0 %447
    %v449 = vrsqrt.pop %v448
    %v450 = vmul.f32 %v448, %v449
    %vm451 = vcmp.eq.f32.partialorder %v448, inf
    %v452 = vsel %vm451, %v448, %v450
    %vm453 = vcmp.eq.f32.partialorder %v448, 0.0
    %v454 = vand.u32 %v448, 2147483648
    %v455 = vsel %vm453, %v454, %v452
    %v457 = vrot.slane %v455, 2
    %v459 = vmul.f32 %v444, %v457
    %v460 = vmax.f32 %v459, 1e-08
    %v461 = vrcp.pop %v460
    %v462 = vmul.f32 %v433, %v461
    %v463 = vld [vmem:[%s7] sm:$0xff]
    %v464 = vld [vmem:[%s7 + $0x8] sm:$0xff]
    %v465 = vld [vmem:[%s7 + $0x10] sm:$0xff]
    %v466 = vld [vmem:[%s7 + $0x18] sm:$0xff]
    %v467 = vld [vmem:[%s7 + $0x20] sm:$0xff]
    %v468 = vld [vmem:[%s7 + $0x28] sm:$0xff]
    %v469 = vld [vmem:[%s7 + $0x30] sm:$0xff]
    %v470 = vld [vmem:[%s7 + $0x38] sm:$0xff]
    %v471 = vld [vmem:[%s7 + $0x40] sm:$0x1]
    %473 = vset.pattern.permute.xlu0 0
    %474 = vperm.xlu0 %473, %v462
    %v475 = vpop.permute.xlu0 %474
    %v477 = vlaneseq
    %v478 = vshrl.u32 %v477, 7
    %v479 = vsub.s32 0, %v478
    %v480 = vrot.slane %v471, %v479
    %v481 = vmul.f32 %v475, %v480
    %vm482 = vcmask 523264
    %v484 = vsel %vm482, %v425, 0
    %486 = vmatprep.subr.mxu0 0.0
    %487 = vmatpush1.msra.mxu0 0.0
    %488 = vmatprep.subr.mxu0 0.0
    %489 = vmatpush1.msra.mxu0 0.0
    %490 = vmatprep.subr.mxu0 0.0
    %491 = vmatpush1.msra.mxu0 0.0
    %492 = vmatprep.subr.mxu0 0.0
    %493 = vmatpush1.msra.mxu0 0.0
    %494 = vmatprep.subr.mxu0 0.0
    %495 = vmatpush1.msra.mxu0 0.0
    %496 = vmatprep.subr.mxu0 0.0
    %497 = vmatpush1.msra.mxu0 0.0
    %498 = vmatprep.subr.mxu0 0.0
    %499 = vmatpush1.msra.mxu0 0.0
    %500 = vmatprep.subr.mxu0 0.0
    %501 = vmatpush1.msra.mxu0 0.0
    %502 = vmatprep.subr.mxu0 0.0
    %503 = vmatpush1.msra.mxu0 %v470
    %504 = vmatprep.subr.mxu0 0.0
    %505 = vmatpush1.msra.mxu0 %v469
    %506 = vmatprep.subr.mxu0 0.0
    %507 = vmatpush1.msra.mxu0 %v468
    %508 = vmatprep.subr.mxu0 0.0
    %509 = vmatpush1.msra.mxu0 %v467
    %510 = vmatprep.subr.mxu0 0.0
    %511 = vmatpush1.msra.mxu0 %v466
    %512 = vmatprep.subr.mxu0 0.0
    %513 = vmatpush1.msra.mxu0 %v465
    %514 = vmatprep.subr.mxu0 0.0
    %515 = vmatpush1.msra.mxu0 %v464
    %516 = vmatprep.subr.mxu0 0.0
    %517 = vmatpush1.msra.mxu0 %v463
    %518 = vmatprep.subr.mxu0 0.0
    %519 = vmatpush2.msra.mxu0 0.0
    %520 = vmatprep.subr.mxu0 0.0
    %521 = vmatpush2.msra.mxu0 0.0
    %522 = vmatprep.subr.mxu0 0.0
    %523 = vmatpush2.msra.mxu0 0.0
    %524 = vmatprep.subr.mxu0 0.0
    %525 = vmatpush2.msra.mxu0 0.0
    %526 = vmatprep.subr.mxu0 0.0
    %527 = vmatpush2.msra.mxu0 0.0
    %528 = vmatprep.subr.mxu0 0.0
    %529 = vmatpush2.msra.mxu0 0.0
    %530 = vmatprep.subr.mxu0 0.0
    %531 = vmatpush2.msra.mxu0 0.0
    %532 = vmatprep.subr.mxu0 0.0
    %533 = vmatpush2.msra.mxu0 0.0
    %534 = vmatprep.subr.mxu0 0.0
    %535 = vmatpush2.msra.mxu0 0.0
    %536 = vmatprep.subr.mxu0 0.0
    %537 = vmatpush2.msra.mxu0 0.0
    %538 = vmatprep.subr.mxu0 0.0
    %539 = vmatpush2.msra.mxu0 0.0
    %540 = vmatprep.subr.mxu0 0.0
    %541 = vmatpush2.msra.mxu0 0.0
    %542 = vmatprep.subr.mxu0 0.0
    %543 = vmatpush2.msra.mxu0 0.0
    %544 = vmatprep.subr.mxu0 0.0
    %545 = vmatpush2.msra.mxu0 0.0
    %546 = vmatprep.subr.mxu0 0.0
    %547 = vmatpush2.msra.mxu0 0.0
    %548 = vmatprep.subr.mxu0 0.0
    %549 = vmatpush2.msra.mxu0 0.0
    %550 = vmatprep.mubr.f32.mxu0 0.0
    %551 = vmatmul.mubr.f32.gmra.mxu0 %v484
    %v552 = vpop.f32.mrf.mxu0
    %v553 = vadd.f32 %v481, %v552
    %v554 = vpop.f32.mrf.mxu0
    %555 = vdwg.mxu0
    %v556 = vld [vmem:[#allocation5] sm:$0x1]
    %v558 = vlaneseq
    %v559 = vshrl.u32 %v558, 7
    %v560 = vsub.s32 0, %v559
    %v561 = vrot.slane %v556, %v560
    %v563 = vadd.f32 %v553, %v561
    %564 = vst [vmem:[%s9] sm:$0x3] %v563
    // Predicated region
    $region46: #{transformer_with_extra_features_forward.1} parent=1 // pred_check
      _
    $region47: #{transformer_with_extra_features_forward.1} parent=1 // pred_check_branch
      %566 = sbr.rel (0) target = $region49
    $region48: #{transformer_with_extra_features_forward.1} parent=1 // pred_region
      _
    $region49: #{transformer_with_extra_features_forward.1} parent=1 // pred_fallthru
      _
    // Predicated region
    $region50: #{transformer_with_extra_features_forward.1} parent=1 // pred_check
      _
    $region51: #{transformer_with_extra_features_forward.1} parent=1 // pred_check_branch
      %568 = sbr.rel (0) target = $region53
    $region52: #{transformer_with_extra_features_forward.1} parent=1 // pred_region
      %s570 = ssub.s32 256, 256
      %571 = vsyncadd [#allocation4], %s570
      %s572 = sshll.u32 [#allocation7], 4
      %s573 = int_to_ptr.vmem [resolvable:$true] %s572
      %578 = dma.vmem_to_hbm [thread:$0]  %s573, 256, %s10, [#allocation4], 128, 128, 8
    $region53: #{transformer_with_extra_features_forward.1} parent=1 // pred_fallthru
      _
    // Predicated region
    $region54: #{transformer_with_extra_features_forward.1} parent=1 // pred_check
      _
    $region55: #{transformer_with_extra_features_forward.1} parent=1 // pred_check_branch
      %580 = sbr.rel (0) target = $region57
    $region56: #{transformer_with_extra_features_forward.1} parent=1 // pred_region
      _
    $region57: #{transformer_with_extra_features_forward.1} parent=1 // pred_fallthru
      _
    // Predicated region
    $region58: #{transformer_with_extra_features_forward.1} parent=1 // pred_check
      _
    $region59: #{transformer_with_extra_features_forward.1} parent=1 // pred_check_branch
      %582 = sbr.rel (0) target = $region61
    $region60: #{transformer_with_extra_features_forward.1} parent=1 // pred_region
      %583 = dma.done [#allocation4], 256
    $region61: #{transformer_with_extra_features_forward.1} parent=1 // pred_fallthru
      _
    %584 = vsyncpa [#allocation3], 1
    %585 = vsyncpa [#allocation6], 1
    %586 = vsyncpa [#allocation4], 1

</llo_original>
